<compile_context>
chip_gen: v7x
topology: tpu7x:2x2x1
jax: 0.10.0
libtpu: 0.0.40
codegen_flags: <defaults>
</compile_context>

<pallas_src>
import functools

import jax
import jax.numpy as jnp
from jax import lax
from jax.experimental import pallas as pl
from jax.experimental.pallas import tpu as pltpu

_LANES = 128
_SUBLANES = 8


def _tree_sum(parts):
    """Pairwise (log-depth) sum of equal-shaped arrays."""
    while len(parts) > 1:
        nxt = [parts[i] + parts[i + 1] for i in range(0, len(parts) - 1, 2)]
        if len(parts) % 2:
            nxt.append(parts[-1])
        parts = nxt
    return parts[0]


def _bce_kernel(lg_ref, tg_ref, out_ref, acc_ref, *, valid_rows, need_row_mask):
    """Accumulate per-channel BCE sums over the (batch-block, row-tile) axes."""
    nb = pl.program_id(2)
    t = pl.program_id(3)

    @pl.when((nb == 0) & (t == 0))
    def _init():
        acc_ref[...] = jnp.zeros_like(acc_ref)

    p = lg_ref[...].astype(jnp.float32)       # (bn, tr, 128)
    tgt = tg_ref[...].astype(jnp.float32)

    # torch.nn.BCELoss clamps each log at -100 BEFORE the target weighting;
    # keeping the clamp inside is what makes masked/OOB elements harmless.
    log_p = jnp.maximum(jnp.log(p), -100.0)
    log_1mp = jnp.maximum(jnp.log(1.0 - p), -100.0)
    # -(t*log_p + (1-t)*log_1mp) == -(log_1mp + t*(log_p - log_1mp))
    contrib = -(log_1mp + tgt * (log_p - log_1mp))

    bn, tr, lanes = contrib.shape
    if need_row_mask:
        # Zero contributions from rows past the valid extent (ragged last tile;
        # OOB block contents are unspecified, so mask them explicitly).
        row = lax.broadcasted_iota(jnp.int32, (bn, tr, lanes), 1)
        contrib = jnp.where(t * tr + row < valid_rows, contrib, 0.0)

    # Tree-reduce the (bn*tr, 128) tile down to (8, 128) in-register, then add
    # once into the tiny accumulator (no full-tile scratch RMW).
    flat = contrib.reshape(bn * tr, lanes)
    total_rows = bn * tr
    groups = total_rows // _SUBLANES
    if groups > 0:
        parts = [flat[g * _SUBLANES:(g + 1) * _SUBLANES, :] for g in range(groups)]
        acc_ref[...] = acc_ref[...] + _tree_sum(parts)
    rem = total_rows - groups * _SUBLANES
    if rem > 0:  # small-shape regime only
        acc_ref[0:rem, :] = acc_ref[0:rem, :] + flat[groups * _SUBLANES:, :]

    @pl.when((nb == pl.num_programs(2) - 1) & (t == pl.num_programs(3) - 1))
    def _finalize():
        out_ref[...] = acc_ref[...]


def multi_class_bce(logits, targets, weights, *, target_block_bytes=1 << 20):
    """logits, targets: (N, C, H, W) probability maps. weights: (C,)."""
    N, C, H, W = logits.shape
    assert targets.shape == logits.shape
    HW = H * W
    M = N * HW

    # Contiguous reshape only — no transpose, no layout change in HBM.
    lg = logits.reshape(N, C, HW)
    tg = targets.reshape(N, C, HW)
    if HW % _LANES != 0:
        # TODO(synk): lane-mask the (<128 element) ragged tail in-kernel instead
        # of this pad; p = t = 1 contributes exactly 0 to the clamped BCE sum.
        pad = (-HW) % _LANES
        lg = jnp.pad(lg, ((0, 0), (0, 0), (0, pad)), constant_values=1.0)
        tg = jnp.pad(tg, ((0, 0), (0, 0), (0, pad)), constant_values=1.0)
    rows = (HW + _LANES - 1) // _LANES
    lg = lg.reshape(N, C, rows, _LANES)
    tg = tg.reshape(N, C, rows, _LANES)

    itemsize = jnp.dtype(lg.dtype).itemsize
    sub = max(_SUBLANES, 32 // itemsize)        # 8 (f32), 16 (bf16), 32 (1-byte)
    target_rows = max(sub, target_block_bytes // (_LANES * itemsize))

    if rows <= sub:
        tr = rows                               # full dim -> always a legal block
    else:
        tr = max(sub, min((rows // sub) * sub, (target_rows // sub) * sub))
    num_tiles = pl.cdiv(rows, tr)
    need_row_mask = (rows % tr) != 0

    # 2-way batch split keeps both TensorCores busy on v7x; harmless on 1-TC chips.
    S = 2 if (N % 2 == 0 and N >= 2) else 1
    nps = N // S

    # Block several batch entries per step when a single row tile is small.
    block_bytes = tr * _LANES * itemsize
    bn = 1
    for d in range(nps, 1, -1):                 # largest divisor of nps under budget
        if nps % d == 0 and d * block_bytes <= target_block_bytes:
            bn = d
            break
    nb_blocks = nps // bn

    kernel = functools.partial(_bce_kernel, valid_rows=rows,
                               need_row_mask=need_row_mask)
    in_map = lambda s, c, nb, t: (s * nb_blocks + nb, c, t, 0)

    out = pl.pallas_call(
        kernel,
        out_shape=jax.ShapeDtypeStruct((S, C, _SUBLANES, _LANES), jnp.float32),
        grid=(S, C, nb_blocks, num_tiles),
        in_specs=[
            pl.BlockSpec((bn, None, tr, _LANES), in_map),
            pl.BlockSpec((bn, None, tr, _LANES), in_map),
        ],
        out_specs=pl.BlockSpec((None, None, _SUBLANES, _LANES),
                               lambda s, c, nb, t: (s, c, 0, 0)),
        scratch_shapes=[pltpu.VMEM((_SUBLANES, _LANES), jnp.float32)],
        compiler_params=pltpu.CompilerParams(
            dimension_semantics=("parallel", "parallel", "arbitrary", "arbitrary")),
    )(lg, tg)

    # Tiny XLA epilogue: per-channel mean, then weighted sum over channels.
    w = jnp.asarray(weights, dtype=jnp.float32).reshape(C)
    per_channel_sum = jnp.sum(out, axis=(0, 2, 3))        # (C,)
    return jnp.sum(per_channel_sum * w) / jnp.float32(M)


if __name__ == "__main__":
    key = jax.random.PRNGKey(0)

    # Plain-JAX reference reproducing the torch module exactly.
    def ref_loss(lg, tg, w):
        n, c = lg.shape[0], lg.shape[1]
        m1 = lg.reshape(n, c, -1)
        m2 = tg.reshape(n, c, -1)
        total = jnp.float32(0.0)
        for cat in range(c):
            p = m1[:, cat, :]
            t = m2[:, cat, :]
            bce = -(t * jnp.maximum(jnp.log(p), -100.0)
                    + (1 - t) * jnp.maximum(jnp.log(1 - p), -100.0))
            total = total + w[cat] * jnp.mean(bce)
        return total

    k1, k2, k3, k4 = jax.random.split(key, 4)

    # Case 1: default module config (weights=[0.5, 0.5] -> C=2), small maps.
    w2 = jnp.array([0.5, 0.5], jnp.float32)
    lg1 = jax.random.uniform(k1, (2, 2, 16, 16), jnp.float32, 1e-4, 1.0 - 1e-4)
    tg1 = jax.random.uniform(k2, (2, 2, 16, 16), jnp.float32, 0.0, 1.0)
    out1 = multi_class_bce(lg1, tg1, w2)
    jax.block_until_ready(out1)
    exp1 = ref_loss(lg1, tg1, w2)
    assert jnp.allclose(out1, exp1, rtol=1e-5, atol=1e-5), (out1, exp1)

    # Case 2: odd batch, 3 channels, spatial size exercising batch blocking and
    # the ragged-row-tile in-kernel mask (rows=18, tr=16).
    w3 = jnp.array([0.2, 0.3, 0.5], jnp.float32)
    lg2 = jax.random.uniform(k3, (3, 3, 48, 48), jnp.float32, 1e-4, 1.0 - 1e-4)
    tg2 = jax.random.uniform(k4, (3, 3, 48, 48), jnp.float32, 0.0, 1.0)
    out2 = multi_class_bce(lg2, tg2, w3)
    jax.block_until_ready(out2)
    exp2 = ref_loss(lg2, tg2, w3)
    assert jnp.allclose(out2, exp2, rtol=1e-5, atol=1e-5), (out2, exp2)

    print("KERNEL_OK")
</pallas_src>

<mosaic_0001>
module attributes {stable_mosaic.version = 11 : i64} {
  func.func @_bce_kernel(%arg0: i32, %arg1: i32, %arg2: i32, %arg3: i32, %arg4: memref<1x1x2x128xf32, #tpu.memory_space<vmem>>, %arg5: memref<1x1x2x128xf32, #tpu.memory_space<vmem>>, %arg6: memref<1x1x8x128xf32, #tpu.memory_space<vmem>>, %arg7: memref<8x128xf32, #tpu.memory_space<vmem>>) attributes {dimension_semantics = [#tpu.dimension_semantics<parallel>, #tpu.dimension_semantics<parallel>, #tpu.dimension_semantics<arbitrary>, #tpu.dimension_semantics<arbitrary>], iteration_bounds = array<i64: 2, 2, 1, 1>, scalar_prefetch = 0 : i64, scratch_operands = 1 : i64, tpu.core_type = #tpu.core_type<tc>, window_params = [{transform_indices = @transform_0, window_bounds = array<i64: 1, 1, 2, 128>}, {transform_indices = @transform_1, window_bounds = array<i64: 1, 1, 2, 128>}, {transform_indices = @transform_2, window_bounds = array<i64: 1, 1, 8, 128>}]} {
    %c0_i32 = arith.constant 0 : i32
    %0 = arith.cmpi eq, %arg2, %c0_i32 : i32
    %c0_i32_0 = arith.constant 0 : i32
    %1 = arith.cmpi eq, %arg3, %c0_i32_0 : i32
    %2 = arith.andi %0, %1 : i1
    %3 = arith.extui %2 : i1 to i32
    %c0_i32_1 = arith.constant 0 : i32
    %4 = arith.cmpi ne, %3, %c0_i32_1 : i32
    scf.if %4 {
      %cst_19 = arith.constant 0.000000e+00 : f32
      %31 = vector.broadcast %cst_19 : f32 to vector<8x128xf32>
      %c0_20 = arith.constant 0 : index
      %c0_21 = arith.constant 0 : index
      %32 = vector.load %arg7[%c0_20, %c0_21] : memref<8x128xf32, #tpu.memory_space<vmem>>, vector<8x128xf32>
      tpu.vector_store %arg7[%c0_20, %c0_21], %31 {strides = array<i32>} : memref<8x128xf32, #tpu.memory_space<vmem>>, vector<8x128xf32>,
    } else {
    }
    %c0 = arith.constant 0 : index
    %c0_2 = arith.constant 0 : index
    %c0_3 = arith.constant 0 : index
    %c0_4 = arith.constant 0 : index
    %5 = vector.load %arg4[%c0, %c0_2, %c0_3, %c0_4] : memref<1x1x2x128xf32, #tpu.memory_space<vmem>>, vector<1x1x2x128xf32>
    %6 = vector.shape_cast %5 : vector<1x1x2x128xf32> to vector<1x2x128xf32>
    %c0_5 = arith.constant 0 : index
    %c0_6 = arith.constant 0 : index
    %c0_7 = arith.constant 0 : index
    %c0_8 = arith.constant 0 : index
    %7 = vector.load %arg5[%c0_5, %c0_6, %c0_7, %c0_8] : memref<1x1x2x128xf32, #tpu.memory_space<vmem>>, vector<1x1x2x128xf32>
    %8 = vector.shape_cast %7 : vector<1x1x2x128xf32> to vector<1x2x128xf32>
    %9 = math.log %6 : vector<1x2x128xf32>
    %cst = arith.constant -1.000000e+02 : f32
    %10 = vector.broadcast %cst : f32 to vector<1x2x128xf32>
    %11 = arith.maximumf %9, %10 : vector<1x2x128xf32>
    %cst_9 = arith.constant 1.000000e+00 : f32
    %12 = vector.broadcast %cst_9 : f32 to vector<1x2x128xf32>
    %13 = arith.subf %12, %6 : vector<1x2x128xf32>
    %14 = math.log %13 : vector<1x2x128xf32>
    %cst_10 = arith.constant -1.000000e+02 : f32
    %15 = vector.broadcast %cst_10 : f32 to vector<1x2x128xf32>
    %16 = arith.maximumf %14, %15 : vector<1x2x128xf32>
    %17 = arith.subf %11, %16 : vector<1x2x128xf32>
    %18 = arith.mulf %8, %17 : vector<1x2x128xf32>
    %19 = arith.addf %16, %18 : vector<1x2x128xf32>
    %cst_11 = arith.constant 0.000000e+00 : f32
    %20 = vector.broadcast %cst_11 : f32 to vector<1x2x128xf32>
    %21 = arith.subf %20, %19 : vector<1x2x128xf32>
    %22 = vector.shape_cast %21 : vector<1x2x128xf32> to vector<2x128xf32>
    %c0_12 = arith.constant 0 : index
    %c0_13 = arith.constant 0 : index
    %23 = vector.load %arg7[%c0_12, %c0_13] : memref<8x128xf32, #tpu.memory_space<vmem>>, vector<2x128xf32>
    %24 = arith.addf %23, %22 : vector<2x128xf32>
    %c0_14 = arith.constant 0 : index
    %c0_15 = arith.constant 0 : index
    %25 = vector.load %arg7[%c0_14, %c0_15] : memref<8x128xf32, #tpu.memory_space<vmem>>, vector<2x128xf32>
    tpu.vector_store %arg7[%c0_14, %c0_15], %24 {strides = array<i32>} : memref<8x128xf32, #tpu.memory_space<vmem>>, vector<2x128xf32>,
    %c0_i32_16 = arith.constant 0 : i32
    %26 = arith.cmpi eq, %arg2, %c0_i32_16 : i32
    %c0_i32_17 = arith.constant 0 : i32
    %27 = arith.cmpi eq, %arg3, %c0_i32_17 : i32
    %28 = arith.andi %26, %27 : i1
    %29 = arith.extui %28 : i1 to i32
    %c0_i32_18 = arith.constant 0 : i32
    %30 = arith.cmpi ne, %29, %c0_i32_18 : i32
    scf.if %30 {
      %c0_19 = arith.constant 0 : index
      %c0_20 = arith.constant 0 : index
      %31 = vector.load %arg7[%c0_19, %c0_20] : memref<8x128xf32, #tpu.memory_space<vmem>>, vector<8x128xf32>
      %c0_21 = arith.constant 0 : index
      %c0_22 = arith.constant 0 : index
      %c0_23 = arith.constant 0 : index
      %c0_24 = arith.constant 0 : index
      %32 = vector.load %arg6[%c0_21, %c0_22, %c0_23, %c0_24] : memref<1x1x8x128xf32, #tpu.memory_space<vmem>>, vector<1x1x8x128xf32>
      %33 = vector.shape_cast %32 : vector<1x1x8x128xf32> to vector<8x128xf32>
      %34 = vector.shape_cast %31 : vector<8x128xf32> to vector<1x1x8x128xf32>
      tpu.vector_store %arg6[%c0_21, %c0_22, %c0_23, %c0_24], %34 {strides = array<i32>} : memref<1x1x8x128xf32, #tpu.memory_space<vmem>>, vector<1x1x8x128xf32>,
    } else {
    }
    return
  }
  func.func @transform_0(%arg0: i32, %arg1: i32, %arg2: i32, %arg3: i32) -> (i32, i32, i32, i32) {
    %c1_i32 = arith.constant 1 : i32
    %0 = arith.muli %arg0, %c1_i32 : i32
    %1 = arith.addi %0, %arg2 : i32
    %c0_i32 = arith.constant 0 : i32
    %c0_i32_0 = arith.constant 0 : i32
    return %1, %arg1, %arg3, %c0_i32 : i32, i32, i32, i32
  }
  func.func @transform_1(%arg0: i32, %arg1: i32, %arg2: i32, %arg3: i32) -> (i32, i32, i32, i32) {
    %c1_i32 = arith.constant 1 : i32
    %0 = arith.muli %arg0, %c1_i32 : i32
    %1 = arith.addi %0, %arg2 : i32
    %c0_i32 = arith.constant 0 : i32
    %c0_i32_0 = arith.constant 0 : i32
    return %1, %arg1, %arg3, %c0_i32 : i32, i32, i32, i32
  }
  func.func @transform_2(%arg0: i32, %arg1: i32, %arg2: i32, %arg3: i32) -> (i32, i32, i32, i32) {
    %c0_i32 = arith.constant 0 : i32
    %c0_i32_0 = arith.constant 0 : i32
    %c0_i32_1 = arith.constant 0 : i32
    return %arg0, %arg1, %c0_i32, %c0_i32_0 : i32, i32, i32, i32
  }
}

</mosaic_0001>

<llo_original>
// kernel: tpu_custom_call.1
$region0: #{tpu_custom_call.1}
  #allocation0 [shape = 'u32[]', space=smem, size = 0x4, offset = 0x4, fixed_abs, tag = 'smem constant byte address 0x4 - core index']
  #allocation1 [shape = 'u32[144,128]{1,0:T(1,128)}', space=vmem, size = 0x12000, scoped, tag = 'internal scratch']
  #allocation2 [shape = 'f32[8,128]{1,0:T(8,128)}', space=vmem, size = 0x1000, scoped, tag = 'scratch operand']
  %s0 = inlined_call_operand.hbm [shape: f32[2,2,2,128], index: 0, kind: input, shape index: {}]
  %s1 = inlined_call_operand.hbm [shape: f32[2,2,2,128], index: 1, kind: input, shape index: {}]
  %s2 = inlined_call_operand.hbm [shape: f32[2,2,8,128], index: 2, kind: output, shape index: {}]
  %s3 = sld [smem:[#allocation0]]
  $region57: #{tpu_custom_call.1} parent=0
    _
  %s5 = ssub.s32 1, %s3
  %s6 = scalar_select 0, %s5, %s3
  $region1: #{tpu_custom_call.1} parent=0
    #allocation3 [shape = 'u8[2048]{0}', space=vmem, size = 0x800, scoped, tag = 'input window, operand 0']
    #allocation4 [shape = 's32[2]{0}', space=sflag, size = 0x8, scoped, tag = 'scoped memory for tpu_custom_call.1']
    #allocation5 [shape = 's32[2]{0}', space=sflag, size = 0x8, scoped, tag = 'scoped memory for tpu_custom_call.1']
    #allocation6 [shape = 'u8[2048]{0}', space=vmem, size = 0x800, scoped, tag = 'input window, operand 1']
    #allocation7 [shape = 's32[2]{0}', space=sflag, size = 0x8, scoped, tag = 'scoped memory for tpu_custom_call.1']
    #allocation8 [shape = 'u8[8192]{0}', space=vmem, size = 0x2000, scoped, tag = 'output window, operand 0']
    %7 = vsyncpa [#allocation4], 0
    %s8 = scalar_lea.sflag [#allocation4], 1
    %9 = vsyncpa %s8, 0
    %10 = vsyncpa [#allocation7], 0
    %s11 = scalar_lea.sflag [#allocation7], 1
    %12 = vsyncpa %s11, 0
    %13 = vsyncpa [#allocation5], 0
    %s14 = scalar_lea.sflag [#allocation5], 1
    %15 = vsyncpa %s14, 0
    loop: start=0, step=1, limit=6
    $region2: #{tpu_custom_call.1} parent=1 // loop_pre_header
      _
    $region3: #{tpu_custom_call.1} parent=1 // loop_header
      %s17 = sphi 0, %s21
      %p18 = scmp.ge.s32.totalorder %s17, 6
      %s24 = sphi 0, %s50
      %s25 = sphi 0, %s46
      %s26 = sphi 0, %s42
      %s27 = sphi 0, %s38
      %s28 = sphi 0, %s24
      %s29 = sphi 0, %s25
      %s30 = sphi 0, %s26
      %s31 = sphi 0, %s27
      %s32 = sphi 0, %s28
      %s33 = sphi 0, %s29
      %s34 = sphi 0, %s30
      %s35 = sphi 0, %s31
      %s59 = sphi 0, %s61
      %s62 = sphi 0, %s59
      %s63 = sphi 0, %s62
      %s79 = sphi 0, %s63
      %s91 = sphi 0, %s93
      %s94 = sphi 0, %s91
      %s95 = sphi 0, %s94
      %s111 = sphi 0, %s95
      %s119 = sphi 0, %s121
      %s122 = sphi 0, %s119
      %s123 = sphi 0, %s122
      %s139 = sphi 0, %s123
    $region4: #{tpu_custom_call.1} parent=1 // loop_header_branch
      %20 = sbr.rel (%p18) target = $region8
    $region5: #{tpu_custom_call.1} parent=1 // loop_body
      %s22 = ssub.s32 %s17, 1
      %s23 = ssub.s32 %s17, 2
      %s36 = sadd.s32 1, %s27
      %p37 = scmp.ge.s32.totalorder %s36, 1
      %s38 = scalar_select %p37, 0, %s36
      %s39 = sadd.s32 1, %s26
      %s40 = scalar_select %p37, %s39, %s26
      %p41 = scmp.ge.s32.totalorder %s40, 1
      %s42 = scalar_select %p41, 0, %s40
      %s43 = sadd.s32 1, %s25
      %s44 = scalar_select %p41, %s43, %s25
      %p45 = scmp.ge.s32.totalorder %s44, 2
      %s46 = scalar_select %p45, 0, %s44
      %s47 = sadd.s32 1, %s24
      %s48 = scalar_select %p45, %s47, %s24
      %p49 = scmp.ge.s32.totalorder %s48, 2
      %s50 = scalar_select %p49, 0, %s48
      %s51 = sadd.s32 %s24, %s26
      %s52 = sadd.s32 %s50, %s42
      %s53 = ssub.s32 %s51, %s52
      %s54 = ssub.s32 %s25, %s46
      %s55 = sor.u32 %s53, %s54
      %s56 = ssub.s32 %s27, %s38
      %s57 = sor.u32 %s55, %s56
      %p58 = scmp.eq.s32.totalorder %s57, 0
      %s60 = sadd.s32 %s59, 1
      %s61 = scalar_select %p58, %s59, %s60
      %p64 = pneg %p58
      %p65 = scmp.eq.s32.totalorder %s17, 3
      %p66 = por %p64, %p65
      %p67 = scmp.ne.s32.totalorder %s59, %s62
      %p68 = scmp.eq.s32.totalorder %s17, 0
      %p69 = por %p67, %p68
      %p70 = scmp.ne.s32.totalorder %s59, %s62
      %p71 = scmp.eq.s32.totalorder %s22, 3
      %p72 = por %p70, %p71
      %p73 = scmp.ne.s32.totalorder %s62, %s63
      %p74 = scmp.eq.s32.totalorder %s22, 0
      %p75 = por %p73, %p74
      %p76 = scmp.ne.s32.totalorder %s62, %s63
      %p77 = scmp.eq.s32.totalorder %s23, 3
      %p78 = por %p76, %p77
      %p80 = scmp.ne.s32.totalorder %s63, %s79
      %p81 = scmp.eq.s32.totalorder %s23, 0
      %p82 = por %p80, %p81
      %s83 = sadd.s32 %s24, %s26
      %s84 = sadd.s32 %s50, %s42
      %s85 = ssub.s32 %s83, %s84
      %s86 = ssub.s32 %s25, %s46
      %s87 = sor.u32 %s85, %s86
      %s88 = ssub.s32 %s27, %s38
      %s89 = sor.u32 %s87, %s88
      %p90 = scmp.eq.s32.totalorder %s89, 0
      %s92 = sadd.s32 %s91, 1
      %s93 = scalar_select %p90, %s91, %s92
      %p96 = pneg %p90
      %p97 = scmp.eq.s32.totalorder %s17, 3
      %p98 = por %p96, %p97
      %p99 = scmp.ne.s32.totalorder %s91, %s94
      %p100 = scmp.eq.s32.totalorder %s17, 0
      %p101 = por %p99, %p100
      %p102 = scmp.ne.s32.totalorder %s91, %s94
      %p103 = scmp.eq.s32.totalorder %s22, 3
      %p104 = por %p102, %p103
      %p105 = scmp.ne.s32.totalorder %s94, %s95
      %p106 = scmp.eq.s32.totalorder %s22, 0
      %p107 = por %p105, %p106
      %p108 = scmp.ne.s32.totalorder %s94, %s95
      %p109 = scmp.eq.s32.totalorder %s23, 3
      %p110 = por %p108, %p109
      %p112 = scmp.ne.s32.totalorder %s95, %s111
      %p113 = scmp.eq.s32.totalorder %s23, 0
      %p114 = por %p112, %p113
      %s115 = ssub.s32 %s24, %s50
      %s116 = ssub.s32 %s25, %s46
      %s117 = sor.u32 %s115, %s116
      %p118 = scmp.eq.s32.totalorder %s117, 0
      %s120 = sadd.s32 %s119, 1
      %s121 = scalar_select %p118, %s119, %s120
      %p124 = pneg %p118
      %p125 = scmp.eq.s32.totalorder %s17, 3
      %p126 = por %p124, %p125
      %p127 = scmp.ne.s32.totalorder %s119, %s122
      %p128 = scmp.eq.s32.totalorder %s17, 0
      %p129 = por %p127, %p128
      %p130 = scmp.ne.s32.totalorder %s119, %s122
      %p131 = scmp.eq.s32.totalorder %s22, 3
      %p132 = por %p130, %p131
      %p133 = scmp.ne.s32.totalorder %s122, %s123
      %p134 = scmp.eq.s32.totalorder %s22, 0
      %p135 = por %p133, %p134
      %p136 = scmp.ne.s32.totalorder %s122, %s123
      %p137 = scmp.eq.s32.totalorder %s23, 3
      %p138 = por %p136, %p137
      %p140 = scmp.ne.s32.totalorder %s123, %s139
      %p141 = scmp.eq.s32.totalorder %s23, 0
      %p142 = por %p140, %p141
      %p143 = scmp.le.s32.totalorder 1, %s17
      %p144 = scmp.lt.s32.totalorder %s17, 5
      %p145 = pnand %p143, %p144
      %p146 = pneg %p145
      // Predicated region
      $region9: #{tpu_custom_call.1} parent=5 // pred_check
        _
      $region10: #{tpu_custom_call.1} parent=5 // pred_check_branch
        %148 = sbr.rel (%p145) target = $region12
      $region11: #{tpu_custom_call.1} parent=5 // pred_region
        %s149 = ssub.s32 %s17, 1
      $region12: #{tpu_custom_call.1} parent=5 // pred_fallthru
        _
      %p150 = scmp.lt.s32.totalorder %s17, 4
      // Predicated region
      $region13: #{tpu_custom_call.1} parent=5 // pred_check
        %p151 = pneg %p150
      $region14: #{tpu_custom_call.1} parent=5 // pred_check_branch
        %153 = sbr.rel (%p151) target = $region16
      $region15: #{tpu_custom_call.1} parent=5 // pred_region
        // Predicated region
        $region17: #{tpu_custom_call.1} parent=15 // pred_check
          %p154 = pneg %p69
        $region18: #{tpu_custom_call.1} parent=15 // pred_check_branch
          %156 = sbr.rel (%p154) target = $region20
        $region19: #{tpu_custom_call.1} parent=15 // pred_region
          %s157 = sand.u32 %s59, 1
          %s158 = scalar_lea.sflag [#allocation4], %s157
          %s159 = sand.u32 %s59, 1
          %s160 = smul.addr %s159, 2
          %s161 = scalar_lea.vmem [#allocation3], %s160
          %s162 = sadd.s32 %s24, %s26
          %s164 = ssub.s32 32, 32
          %165 = vsyncadd %s158, %s164
          %s166 = sadd.s32 %s27, %s25
          %s167 = smul.addr %s162, 2
          %s168 = sadd.s32 %s166, %s167
          %s169 = smul.addr %s168, 32
          %s170 = scalar_lea.hbm %s0, %s169
          %s172 = sshll.u32 %s161, 4
          %s173 = int_to_ptr.vmem [resolvable:$true] %s172
          %175 = dma.hbm_to_vmem [thread:$0]  %s170, 32, %s173, %s158
        $region20: #{tpu_custom_call.1} parent=15 // pred_fallthru
          _
        // Predicated region
        $region21: #{tpu_custom_call.1} parent=15 // pred_check
          %p176 = pneg %p101
        $region22: #{tpu_custom_call.1} parent=15 // pred_check_branch
          %178 = sbr.rel (%p176) target = $region24
        $region23: #{tpu_custom_call.1} parent=15 // pred_region
          %s179 = sand.u32 %s91, 1
          %s180 = scalar_lea.sflag [#allocation7], %s179
          %s181 = sand.u32 %s91, 1
          %s182 = smul.addr %s181, 2
          %s183 = scalar_lea.vmem [#allocation6], %s182
          %s184 = sadd.s32 %s24, %s26
          %s186 = ssub.s32 32, 32
          %187 = vsyncadd %s180, %s186
          %s188 = sadd.s32 %s27, %s25
          %s189 = smul.addr %s184, 2
          %s190 = sadd.s32 %s188, %s189
          %s191 = smul.addr %s190, 32
          %s192 = scalar_lea.hbm %s1, %s191
          %s194 = sshll.u32 %s183, 4
          %s195 = int_to_ptr.vmem [resolvable:$true] %s194
          %197 = dma.hbm_to_vmem [thread:$0]  %s192, 32, %s195, %s180
        $region24: #{tpu_custom_call.1} parent=15 // pred_fallthru
          _
      $region16: #{tpu_custom_call.1} parent=5 // pred_fallthru
        _
      %p198 = scmp.le.s32.totalorder 1, %s17
      %p199 = scmp.lt.s32.totalorder %s17, 5
      %p200 = pnand %p198, %p199
      %p201 = pneg %p200
      // Predicated region
      $region25: #{tpu_custom_call.1} parent=5 // pred_check
        _
      $region26: #{tpu_custom_call.1} parent=5 // pred_check_branch
        %203 = sbr.rel (%p200) target = $region28
      $region27: #{tpu_custom_call.1} parent=5 // pred_region
        %s204 = ssub.s32 %s17, 1
        %s205 = sand.u32 %s62, 1
        %s206 = scalar_lea.sflag [#allocation4], %s205
        %s207 = sand.u32 %s62, 1
        %s208 = smul.addr %s207, 2
        %s209 = scalar_lea.vmem [#allocation3], %s208
        // Predicated region
        $region29: #{tpu_custom_call.1} parent=27 // pred_check
          %p210 = pneg %p75
        $region30: #{tpu_custom_call.1} parent=27 // pred_check_branch
          %212 = sbr.rel (%p210) target = $region32
        $region31: #{tpu_custom_call.1} parent=27 // pred_region
          %213 = dma.done %s206, 32
        $region32: #{tpu_custom_call.1} parent=27 // pred_fallthru
          _
        %s214 = sand.u32 %s94, 1
        %s215 = scalar_lea.sflag [#allocation7], %s214
        %s216 = sand.u32 %s94, 1
        %s217 = smul.addr %s216, 2
        %s218 = scalar_lea.vmem [#allocation6], %s217
        // Predicated region
        $region33: #{tpu_custom_call.1} parent=27 // pred_check
          %p219 = pneg %p107
        $region34: #{tpu_custom_call.1} parent=27 // pred_check_branch
          %221 = sbr.rel (%p219) target = $region36
        $region35: #{tpu_custom_call.1} parent=27 // pred_region
          %222 = dma.done %s215, 32
        $region36: #{tpu_custom_call.1} parent=27 // pred_fallthru
          _
        %s223 = sand.u32 %s62, 1
        %s224 = scalar_lea.sflag [#allocation4], %s223
        %s225 = sand.u32 %s62, 1
        %s226 = smul.addr %s225, 2
        %s227 = scalar_lea.vmem [#allocation3], %s226
        %p228 = pneg %p75
        %p229 = pneg %p72
        %s230 = sand.u32 %s94, 1
        %s231 = scalar_lea.sflag [#allocation7], %s230
        %s232 = sand.u32 %s94, 1
        %s233 = smul.addr %s232, 2
        %s234 = scalar_lea.vmem [#allocation6], %s233
        %p235 = pneg %p107
        %p236 = pneg %p104
        %p237 = pneg %p135
        %p238 = pneg %p132
        %s239 = sand.u32 %s122, 1
        %s240 = scalar_lea.sflag [#allocation5], %s239
        %s241 = sand.u32 %s122, 1
        %s242 = smul.addr %s241, 8
        %s243 = scalar_lea.vmem [#allocation8], %s242
        %s244 = sadd.s32 %s28, %s30
        %s245 = sadd.s32 %s28, %s30
        %p246 = scmp.eq.s32.totalorder %s30, 0
        %p247 = scmp.eq.s32.totalorder %s31, 0
        %p248 = pnand %p246, %p247
        %p249 = pneg %p248
        // Predicated region
        $region37: #{tpu_custom_call.1} parent=27 // pred_check
          _
        $region38: #{tpu_custom_call.1} parent=27 // pred_check_branch
          %251 = sbr.rel (%p248) target = $region40
        $region39: #{tpu_custom_call.1} parent=27 // pred_region
          %252 = vst [vmem:[#allocation2] sm:$0xff] 0.0
        $region40: #{tpu_custom_call.1} parent=27 // pred_fallthru
          _
        %v253 = vld [vmem:[%s209] sm:$0x3]
        %v254 = vld [vmem:[%s218] sm:$0x3]
        %v255 = vlog2.pop %v253
        %v256 = vmul.f32 %v255, 0.6931472
        %v257 = vmax.f32 %v256, -100.0
        %v258 = vsub.f32 1.0, %v253
        %v259 = vlog2.pop %v258
        %v260 = vmul.f32 %v259, 0.6931472
        %v261 = vmax.f32 %v260, -100.0
        %v262 = vsub.f32 %v257, %v261
        %v263 = vmul.f32 %v254, %v262
        %v264 = vadd.f32 %v261, %v263
        %v265 = vsub.f32 0.0, %v264
        %v266 = vld [vmem:[#allocation2] sm:$0x3]
        %v267 = vadd.f32 %v266, %v265
        %268 = vst [vmem:[#allocation2] sm:$0x3] %v267
        // Predicated region
        $region41: #{tpu_custom_call.1} parent=27 // pred_check
          _
        $region42: #{tpu_custom_call.1} parent=27 // pred_check_branch
          %270 = sbr.rel (%p248) target = $region44
        $region43: #{tpu_custom_call.1} parent=27 // pred_region
          %v271 = vld [vmem:[#allocation2] sm:$0xff]
          %272 = vst [vmem:[%s243] sm:$0xff] %v271
        $region44: #{tpu_custom_call.1} parent=27 // pred_fallthru
          _
        %s273 = sand.u32 %s122, 1
        %s274 = scalar_lea.sflag [#allocation5], %s273
        %s275 = sand.u32 %s122, 1
        %s276 = smul.addr %s275, 8
        %s277 = scalar_lea.vmem [#allocation8], %s276
        // Predicated region
        $region45: #{tpu_custom_call.1} parent=27 // pred_check
          %p278 = pneg %p132
        $region46: #{tpu_custom_call.1} parent=27 // pred_check_branch
          %280 = sbr.rel (%p278) target = $region48
        $region47: #{tpu_custom_call.1} parent=27 // pred_region
          %s282 = ssub.s32 128, 128
          %283 = vsyncadd %s274, %s282
          %s284 = smul.addr %s28, 2
          %s285 = sadd.s32 %s29, %s284
          %s286 = smul.addr %s285, 128
          %s287 = scalar_lea.hbm %s2, %s286
          %s289 = sshll.u32 %s277, 4
          %s290 = int_to_ptr.vmem [resolvable:$true] %s289
          %292 = dma.vmem_to_hbm [thread:$0]  %s290, 128, %s287, %s274
        $region48: #{tpu_custom_call.1} parent=27 // pred_fallthru
          _
      $region28: #{tpu_custom_call.1} parent=5 // pred_fallthru
        _
      %p293 = scmp.le.s32.totalorder 2, %s17
      // Predicated region
      $region49: #{tpu_custom_call.1} parent=5 // pred_check
        %p294 = pneg %p293
      $region50: #{tpu_custom_call.1} parent=5 // pred_check_branch
        %296 = sbr.rel (%p294) target = $region52
      $region51: #{tpu_custom_call.1} parent=5 // pred_region
        %s297 = ssub.s32 %s17, 2
        // Predicated region
        $region53: #{tpu_custom_call.1} parent=51 // pred_check
          %p298 = pneg %p138
        $region54: #{tpu_custom_call.1} parent=51 // pred_check_branch
          %300 = sbr.rel (%p298) target = $region56
        $region55: #{tpu_custom_call.1} parent=51 // pred_region
          %s301 = sand.u32 %s123, 1
          %s302 = scalar_lea.sflag [#allocation5], %s301
          %s303 = sand.u32 %s123, 1
          %s304 = smul.addr %s303, 8
          %s305 = scalar_lea.vmem [#allocation8], %s304
          %306 = dma.done %s302, 128
        $region56: #{tpu_custom_call.1} parent=51 // pred_fallthru
          _
      $region52: #{tpu_custom_call.1} parent=5 // pred_fallthru
        _
    $region6: #{tpu_custom_call.1} parent=1 // loop_footer
      %s21 = sadd.s32 1, %s17
    $region7: #{tpu_custom_call.1} parent=1 // loop_footer_branch
      %16 = sbr.rel target = $region3
    $region8: #{tpu_custom_call.1} parent=1 // loop_exit
      _
    %307 = vsyncpa [#allocation4], 1
    %s308 = scalar_lea.sflag [#allocation4], 1
    %309 = vsyncpa %s308, 1
    %310 = vsyncpa [#allocation7], 1
    %s311 = scalar_lea.sflag [#allocation7], 1
    %312 = vsyncpa %s311, 1
    %313 = vsyncpa [#allocation5], 1
    %s314 = scalar_lea.sflag [#allocation5], 1
    %315 = vsyncpa %s314, 1

</llo_original>
